<compile_context>
chip_gen: v6e
topology: v6e:2x2x1
jax: 0.10.0
libtpu: 0.0.40
codegen_flags: <defaults>
</compile_context>

<pallas_src>
import functools

import numpy as np
import jax
import jax.numpy as jnp
from jax.experimental import pallas as pl
from jax.experimental.pallas import tpu as pltpu


# ----------------------------- parameter setup ------------------------------

_FILTERS = {
    1: [1.0],
    2: [1.0, 1.0],
    3: [1.0, 2.0, 1.0],
    4: [1.0, 3.0, 3.0, 1.0],
    5: [1.0, 4.0, 6.0, 4.0, 1.0],
    6: [1.0, 5.0, 10.0, 10.0, 5.0, 1.0],
    7: [1.0, 6.0, 15.0, 20.0, 15.0, 6.0, 1.0],
}


@functools.lru_cache(maxsize=None)
def _get_filter_1d(filt_size=3):
    a = np.asarray(_FILTERS[filt_size], np.float64)
    # outer(a, a) / sum(outer) == separable product of (a / a.sum()) per axis.
    return a / a.sum()


@functools.lru_cache(maxsize=None)
def _make_blur_matrix(size, filt_size=3, stride=2, pad_off=0):
    """(Out, size) matrix folding reflect-pad + 1-D blur filter + stride."""
    a = _get_filter_1d(filt_size)
    pad_l = int(1.0 * (filt_size - 1) / 2) + pad_off
    pad_r = int(np.ceil(1.0 * (filt_size - 1) / 2)) + pad_off
    # ReflectionPad2d index map for one axis.
    idx = (list(range(pad_l, 0, -1))
           + list(range(size))
           + list(range(size - 2, size - 2 - pad_r, -1)))
    padded = size + pad_l + pad_r
    out = (padded - filt_size) // stride + 1
    A = np.zeros((out, size), np.float64)
    for i in range(out):
        for d in range(filt_size):
            A[i, idx[i * stride + d]] += a[d]
    return A


@functools.lru_cache(maxsize=None)
def _make_kron_matrix_t(h, w, filt_size=3, stride=2, pad_off=0):
    """K^T = kron(A_h, A_w)^T : (H*W, Ho*Wo), so out_flat = x_flat @ K^T."""
    A_h = _make_blur_matrix(h, filt_size, stride, pad_off)
    A_w = _make_blur_matrix(w, filt_size, stride, pad_off)
    kt = np.ascontiguousarray(np.kron(A_h, A_w).T).astype(np.float32)
    return kt, A_h.shape[0], A_w.shape[0]


# --------------------------------- kernels -----------------------------------

def _kron_blur_kernel(x_ref, kt_ref, o_ref):
    # x_ref: (TC, H*W)   kt_ref: (H*W, Ho*Wo)   o_ref: (TC, Ho*Wo)
    # Single lane-dense matmul; f32 accumulation regardless of operand dtype.
    o_ref[...] = jnp.dot(x_ref[...], kt_ref[...],
                         preferred_element_type=jnp.float32).astype(o_ref.dtype)


def _separable_blur_kernel(x_ref, ah_ref, awt_ref, o_ref):
    # x_ref: (TC, H, W)  ah_ref: (Ho, H)  awt_ref: (W, Wo)  o_ref: (TC, Ho, Wo)
    tc, h, w = x_ref.shape
    ho = ah_ref.shape[0]
    wo = awt_ref.shape[1]
    # (1) W-side contraction as a single tall flattened matmul (M = TC*H rows).
    # TODO(synk): if H is not a multiple of the dtype's sublane count this
    # reshape is a relayout copy; pad H in the wrapper for such shapes.
    x2d = x_ref[...].reshape(tc * h, w)
    xw = jnp.dot(x2d, awt_ref[...], preferred_element_type=jnp.float32)  # (TC*H, Wo)
    # Keep MXU operands in the (narrow) input dtype; accumulate in f32.
    xw = xw.reshape(tc, h, wo).astype(x_ref.dtype)
    # (2) H-side contraction batched over the channel block.
    # TODO(synk): replace the broadcast + batched einsum with one shared-LHS
    # lax.dot_general producing an (Ho, N, Wo) output layout; only relevant for
    # the large-H/W shapes that take this fallback path.
    ah = jnp.broadcast_to(ah_ref[...], (tc, ho, h))
    out = jnp.einsum("coh,chw->cow", ah, xw,
                     preferred_element_type=jnp.float32)                 # (TC, Ho, Wo)
    o_ref[...] = out.astype(o_ref.dtype)


# ------------------------------- block sizing --------------------------------

def _ru(x, m):
    return ((x + m - 1) // m) * m


def _cdiv(a, b):
    return -(-a // b)


def _sublanes(dtype):
    # sublane packing: f32 -> 8, bf16/f16 -> 16, int8/fp8 -> 32
    return {4: 8, 2: 16, 1: 32}.get(jnp.dtype(dtype).itemsize, 8)


def _vmem_capacity_bytes():
    """Physical VMEM per TensorCore (generation-aware, conservative fallback)."""
    try:
        info = pltpu.get_tpu_info()
        cap = getattr(info, "vmem_capacity_bytes", None)
        if cap:
            return int(cap)
    except Exception:
        pass
    return 64 * 1024 * 1024          # v7x per-TC VMEM (smallest of the three)


def _choose_tc_kron(n, hw, howo, dtype, budget):
    """Rows (B*C channels) per grid step for the fused-Kronecker path."""
    esz = jnp.dtype(dtype).itemsize
    sub = _sublanes(dtype)
    lane_in = _ru(hw, 128)
    lane_out = _ru(howo, 128)
    # Fixed per-step cost: the (double-buffered) K matrix block.
    k_bytes = 2 * _ru(hw, sub) * lane_out * esz
    # Per-row cost, (sublane,128)-padding aware:
    per_row = (2 * lane_in * esz          # double-buffered input block
               + 2 * lane_out * esz       # double-buffered output block
               + 4 * lane_out)            # f32 matmul result temporary
    avail = max(budget - k_bytes, per_row * sub)
    cap_rows = min(1024, max(sub, avail // per_row))   # diminishing returns >1k
    tc = min(_ru(n, sub), max(sub, (cap_rows // sub) * sub))
    steps = _cdiv(n, tc)
    # Prefer an even step count (>= 2): 2-TensorCore chips (v7x) split the
    # "parallel" grid axis; an odd count idles one core part of the time.
    if steps > 1 and steps % 2 == 1:
        tc_even = _ru(_cdiv(n, steps + 1), sub)
        if tc_even >= sub:
            tc = tc_even
            steps = _cdiv(n, tc)
    return tc, steps


def _choose_tc_separable(n, h, w, ho, wo, dtype, budget):
    """Channels per grid step for the separable (large-spatial) fallback."""
    esz = jnp.dtype(dtype).itemsize
    sub = _sublanes(dtype)
    lane_w, lane_wo, lane_h = _ru(w, 128), _ru(wo, 128), _ru(h, 128)
    fixed = 2 * (_ru(ho, sub) * lane_h + _ru(w, sub) * lane_wo) * esz
    per_chan = (2 * _ru(h, sub) * lane_w * esz        # double-buffered input
                + 2 * _ru(ho, sub) * lane_wo * esz    # double-buffered output
                + 4 * _ru(h, 8) * lane_wo             # xw f32 temporary
                + esz * _ru(ho, sub) * lane_h         # broadcast A_h copy
                + 4 * _ru(ho, 8) * lane_wo)           # f32 result temporary
    avail = max(budget - fixed, per_chan)
    tc = max(1, min(256, avail // per_chan, n))
    steps = _cdiv(n, tc)
    if steps > 1 and steps % 2 == 1:
        tc = _cdiv(n, steps + 1)
        steps = _cdiv(n, tc)
    return tc, steps


# --------------------------------- wrappers -----------------------------------

def _downsample_kron(xf, kt_np, n, hw, howo, out_dtype, compute_dtype):
    kt = jnp.asarray(kt_np, dtype=compute_dtype)
    cap = _vmem_capacity_bytes()
    budget = min(64 * 1024 * 1024, cap // 2)
    tc, steps = _choose_tc_kron(n, hw, howo, compute_dtype, budget)
    n_pad = steps * tc
    if n_pad != n:
        # Zero-pad the channel axis instead of collapsing to TC=1 (prime N).
        xf = jnp.pad(xf, ((0, n_pad - n), (0, 0)))

    # Triple-buffer the input DMA when there are enough steps to overlap.
    in_bufs = 3 if steps >= 4 else 2
    x_spec_kwargs = {"pipeline_mode": pl.Buffered(3)} if in_bufs == 3 else {}

    esz = jnp.dtype(compute_dtype).itemsize
    sub = _sublanes(compute_dtype)
    lane_in = _ru(hw, 128)
    lane_out = _ru(howo, 128)
    footprint = (in_bufs * _ru(tc, sub) * lane_in * esz
                 + 2 * _ru(tc, sub) * lane_out * esz
                 + 4 * _ru(tc, 8) * lane_out
                 + 2 * _ru(hw, sub) * lane_out * esz)
    vmem_limit = int(min(max(16 * 1024 * 1024, 2 * footprint), cap * 3 // 4))

    out = pl.pallas_call(
        _kron_blur_kernel,
        out_shape=jax.ShapeDtypeStruct((n_pad, howo), out_dtype),
        grid_spec=pltpu.PrefetchScalarGridSpec(
            num_scalar_prefetch=0,
            grid=(steps,),
            in_specs=[
                pl.BlockSpec((tc, hw), lambda i: (i, 0), **x_spec_kwargs),
                pl.BlockSpec((hw, howo), lambda i: (0, 0)),
            ],
            out_specs=pl.BlockSpec((tc, howo), lambda i: (i, 0)),
        ),
        compiler_params=pltpu.CompilerParams(
            dimension_semantics=("parallel",),
            vmem_limit_bytes=vmem_limit),
    )(xf, kt)
    return out[:n]


def _downsample_separable(xf, A_h, A_w, n, h, w, ho, wo, out_dtype, compute_dtype):
    ah = jnp.asarray(A_h, dtype=compute_dtype)
    awt = jnp.asarray(np.ascontiguousarray(A_w.T), dtype=compute_dtype)
    cap = _vmem_capacity_bytes()
    budget = min(64 * 1024 * 1024, cap // 2)
    tc, steps = _choose_tc_separable(n, h, w, ho, wo, compute_dtype, budget)
    n_pad = steps * tc
    if n_pad != n:
        xf = jnp.pad(xf, ((0, n_pad - n), (0, 0), (0, 0)))

    esz = jnp.dtype(compute_dtype).itemsize
    sub = _sublanes(compute_dtype)
    footprint = (2 * tc * _ru(h, sub) * _ru(w, 128) * esz
                 + 2 * tc * _ru(ho, sub) * _ru(wo, 128) * esz
                 + 4 * tc * (_ru(h, 8) + _ru(ho, 8)) * _ru(wo, 128)
                 + tc * esz * _ru(ho, sub) * _ru(h, 128)
                 + 2 * esz * (_ru(ho, sub) * _ru(h, 128)
                              + _ru(w, sub) * _ru(wo, 128)))
    vmem_limit = int(min(max(16 * 1024 * 1024, 2 * footprint), cap * 3 // 4))

    out = pl.pallas_call(
        _separable_blur_kernel,
        out_shape=jax.ShapeDtypeStruct((n_pad, ho, wo), out_dtype),
        grid_spec=pltpu.PrefetchScalarGridSpec(
            num_scalar_prefetch=0,
            grid=(steps,),
            in_specs=[
                pl.BlockSpec((tc, h, w), lambda i: (i, 0, 0)),
                pl.BlockSpec((ho, h), lambda i: (0, 0)),
                pl.BlockSpec((w, wo), lambda i: (0, 0)),
            ],
            out_specs=pl.BlockSpec((tc, ho, wo), lambda i: (i, 0, 0)),
        ),
        compiler_params=pltpu.CompilerParams(
            dimension_semantics=("parallel",),
            vmem_limit_bytes=vmem_limit),
    )(xf, ah, awt)
    return out[:n]


def downsample(x, filt_size=3, stride=2, pad_off=0):
    """Pallas equivalent of Downsample(channels=x.shape[1], ...).forward(x)."""
    B, C, H, W = x.shape
    kt_np, Ho, Wo = _make_kron_matrix_t(H, W, filt_size, stride, pad_off)

    if jnp.issubdtype(x.dtype, jnp.floating):
        compute_dtype = x.dtype
    else:
        # TODO(synk): integer inputs are upcast for compute and truncated (not
        # rounded) on the final store; the PyTorch module does not take ints.
        compute_dtype = jnp.float32
    out_dtype = x.dtype

    N = B * C
    HW, HoWo = H * W, Ho * Wo
    ksz = jnp.dtype(compute_dtype).itemsize

    # Lane-dense Kronecker path when the fused (H*W, Ho*Wo) matrix is small;
    # for large spatial sizes its O((H*W)*(Ho*Wo)) FLOPs/VMEM would dominate,
    # so fall back to the separable two-matmul path.
    k_padded_bytes = _ru(HW, _sublanes(compute_dtype)) * _ru(HoWo, 128) * ksz
    if k_padded_bytes <= 4 * 1024 * 1024:
        xf = x.reshape(N, HW).astype(compute_dtype)
        out = _downsample_kron(xf, kt_np, N, HW, HoWo, out_dtype, compute_dtype)
    else:
        A_h = _make_blur_matrix(H, filt_size, stride, pad_off)
        A_w = _make_blur_matrix(W, filt_size, stride, pad_off)
        xf = x.reshape(N, H, W).astype(compute_dtype)
        out = _downsample_separable(xf, A_h, A_w, N, H, W, Ho, Wo,
                                    out_dtype, compute_dtype)
    return out.reshape(B, C, Ho, Wo)


# ------------------------------ numpy reference ------------------------------

def _reference(x_np, filt_size=3, stride=2, pad_off=0):
    a = np.asarray(_get_filter_1d(filt_size), np.float64)
    f = np.outer(a, a)
    pad_l = int(1.0 * (filt_size - 1) / 2) + pad_off
    pad_r = int(np.ceil(1.0 * (filt_size - 1) / 2)) + pad_off
    xp = np.pad(x_np.astype(np.float64),
                ((0, 0), (0, 0), (pad_l, pad_r), (pad_l, pad_r)),
                mode="reflect")
    B, C, Hp, Wp = xp.shape
    Ho = (Hp - filt_size) // stride + 1
    Wo = (Wp - filt_size) // stride + 1
    out = np.zeros((B, C, Ho, Wo), np.float64)
    for i in range(Ho):
        for j in range(Wo):
            patch = xp[:, :, i * stride:i * stride + filt_size,
                       j * stride:j * stride + filt_size]
            out[:, :, i, j] = (patch * f).sum(axis=(2, 3))
    return out.astype(np.float32)


if __name__ == "__main__":
    key = jax.random.PRNGKey(0)
    k1, k2, k3 = jax.random.split(key, 3)

    # 1) Primary shape: lane-dense Kronecker path, single aligned block.
    x1 = jax.random.normal(k1, (2, 4, 16, 16), dtype=jnp.float32)
    y1 = jax.block_until_ready(downsample(x1, filt_size=3, stride=2, pad_off=0))
    ref1 = _reference(np.asarray(x1), filt_size=3, stride=2, pad_off=0)
    assert y1.shape == ref1.shape, (y1.shape, ref1.shape)
    np.testing.assert_allclose(np.asarray(y1), ref1, rtol=1e-5, atol=1e-5)

    # 2) Odd channel count + non-aligned spatial dims: exercises N zero-padding.
    x2 = jax.random.normal(k2, (3, 2, 10, 10), dtype=jnp.float32)
    y2 = jax.block_until_ready(downsample(x2, filt_size=3, stride=2, pad_off=0))
    ref2 = _reference(np.asarray(x2), filt_size=3, stride=2, pad_off=0)
    np.testing.assert_allclose(np.asarray(y2), ref2, rtol=1e-5, atol=1e-5)

    # 3) Larger spatial size: exercises the separable fallback path.
    x3 = jax.random.normal(k3, (1, 2, 64, 64), dtype=jnp.float32)
    y3 = jax.block_until_ready(downsample(x3, filt_size=3, stride=2, pad_off=0))
    ref3 = _reference(np.asarray(x3), filt_size=3, stride=2, pad_off=0)
    np.testing.assert_allclose(np.asarray(y3), ref3, rtol=1e-5, atol=1e-5)

    print("KERNEL_OK")
</pallas_src>

<mosaic_0001>
module attributes {stable_mosaic.version = 11 : i64} {
  func.func @_kron_blur_kernel(%arg0: i32, %arg1: memref<8x256xf32, #tpu.memory_space<vmem>>, %arg2: memref<256x64xf32, #tpu.memory_space<vmem>>, %arg3: memref<8x64xf32, #tpu.memory_space<vmem>>) attributes {dimension_semantics = [#tpu.dimension_semantics<parallel>], iteration_bounds = array<i64: 1>, scalar_prefetch = 0 : i64, scratch_operands = 0 : i64, tpu.core_type = #tpu.core_type<tc>, window_params = [{transform_indices = @transform_0, window_bounds = array<i64: 8, 256>}, {pipeline_mode = #tpu.pipeline_mode<synchronous>, transform_indices = @transform_1, window_bounds = array<i64: 256, 64>}, {transform_indices = @transform_2, window_bounds = array<i64: 8, 64>}]} {
    %c0 = arith.constant 0 : index
    %c0_0 = arith.constant 0 : index
    %0 = vector.load %arg1[%c0, %c0_0] : memref<8x256xf32, #tpu.memory_space<vmem>>, vector<8x256xf32>
    %c0_1 = arith.constant 0 : index
    %c0_2 = arith.constant 0 : index
    %1 = vector.load %arg2[%c0_1, %c0_2] : memref<256x64xf32, #tpu.memory_space<vmem>>, vector<256x64xf32>
    %cst = arith.constant dense<0.000000e+00> : vector<8x64xf32>
    %2 = tpu.matmul %0, %1, %cst {dimension_numbers = #tpu.dot_dimension_numbers<[1], [0], [0], [1], [0, 0, 1, 1], [], []>} : vector<8x256xf32>, vector<256x64xf32>, vector<8x64xf32> -> vector<8x64xf32>
    %c0_3 = arith.constant 0 : index
    %c0_4 = arith.constant 0 : index
    %3 = vector.load %arg3[%c0_3, %c0_4] : memref<8x64xf32, #tpu.memory_space<vmem>>, vector<8x64xf32>
    tpu.vector_store %arg3[%c0_3, %c0_4], %2 {strides = array<i32>} : memref<8x64xf32, #tpu.memory_space<vmem>>, vector<8x64xf32>,
    return
  }
  func.func @transform_0(%arg0: i32) -> (i32, i32) {
    %c0_i32 = arith.constant 0 : i32
    %c0_i32_0 = arith.constant 0 : i32
    return %arg0, %c0_i32 : i32, i32
  }
  func.func @transform_1(%arg0: i32) -> (i32, i32) {
    %c0_i32 = arith.constant 0 : i32
    %c0_i32_0 = arith.constant 0 : i32
    %c0_i32_1 = arith.constant 0 : i32
    return %c0_i32, %c0_i32_0 : i32, i32
  }
  func.func @transform_2(%arg0: i32) -> (i32, i32) {
    %c0_i32 = arith.constant 0 : i32
    %c0_i32_0 = arith.constant 0 : i32
    return %arg0, %c0_i32 : i32, i32
  }
}

</mosaic_0001>

<llo_original>
// kernel: tpu_custom_call.1
$region0: #{tpu_custom_call.1}
  #allocation0 [shape = 'u32[]', space=smem, size = 0x4, offset = 0x4, fixed_abs, tag = 'smem constant byte address 0x4 - core index']
  #allocation1 [shape = 'u32[144,128]{1,0:T(1,128)}', space=vmem, size = 0x12000, scoped, tag = 'internal scratch']
  %s0 = inlined_call_operand.vmem [shape: f32[8,256], index: 0, kind: input, shape index: {}]
  %s1 = inlined_call_operand.vmem [shape: f32[256,64], index: 1, kind: input, shape index: {}]
  %s2 = inlined_call_operand.hbm [shape: f32[8,64], index: 2, kind: output, shape index: {}]
  %s3 = sld [smem:[#allocation0]]
  $region18: #{tpu_custom_call.1} parent=0
    _
  %s5 = ssub.s32 1, %s3
  %s6 = scalar_select 0, %s5, %s3
  $region1: #{tpu_custom_call.1} parent=0
    #allocation2 [shape = 'u8[4096]{0}', space=vmem, size = 0x1000, scoped, tag = 'output window, operand 0, single buffered']
    #allocation3 [shape = 's32[1]{0}', space=sflag, size = 0x4, scoped, tag = 'scoped memory for tpu_custom_call.1']
    %7 = vsyncpa [#allocation3], 0
    // Predicated region
    $region2: #{tpu_custom_call.1} parent=1 // pred_check
      _
    $region3: #{tpu_custom_call.1} parent=1 // pred_check_branch
      %9 = sbr.rel (0) target = $region5
    $region4: #{tpu_custom_call.1} parent=1 // pred_region
      _
    $region5: #{tpu_custom_call.1} parent=1 // pred_fallthru
      _
    // Predicated region
    $region6: #{tpu_custom_call.1} parent=1 // pred_check
      _
    $region7: #{tpu_custom_call.1} parent=1 // pred_check_branch
      %11 = sbr.rel (0) target = $region9
    $region8: #{tpu_custom_call.1} parent=1 // pred_region
      _
    $region9: #{tpu_custom_call.1} parent=1 // pred_fallthru
      _
    %v12 = vld [vmem:[%s0] sm:$0xff]
    %v13 = vld [vmem:[%s0 + $0x8] sm:$0xff]
    %v14 = vld [vmem:[%s1] sm:$0xff]
    %v15 = vld [vmem:[%s1 + $0x8] sm:$0xff]
    %v16 = vld [vmem:[%s1 + $0x10] sm:$0xff]
    %v17 = vld [vmem:[%s1 + $0x18] sm:$0xff]
    %v18 = vld [vmem:[%s1 + $0x20] sm:$0xff]
    %v19 = vld [vmem:[%s1 + $0x28] sm:$0xff]
    %v20 = vld [vmem:[%s1 + $0x30] sm:$0xff]
    %v21 = vld [vmem:[%s1 + $0x38] sm:$0xff]
    %v22 = vld [vmem:[%s1 + $0x40] sm:$0xff]
    %v23 = vld [vmem:[%s1 + $0x48] sm:$0xff]
    %v24 = vld [vmem:[%s1 + $0x50] sm:$0xff]
    %v25 = vld [vmem:[%s1 + $0x58] sm:$0xff]
    %v26 = vld [vmem:[%s1 + $0x60] sm:$0xff]
    %v27 = vld [vmem:[%s1 + $0x68] sm:$0xff]
    %v28 = vld [vmem:[%s1 + $0x70] sm:$0xff]
    %v29 = vld [vmem:[%s1 + $0x78] sm:$0xff]
    %v30 = vld [vmem:[%s1 + $0x80] sm:$0xff]
    %v31 = vld [vmem:[%s1 + $0x88] sm:$0xff]
    %v32 = vld [vmem:[%s1 + $0x90] sm:$0xff]
    %v33 = vld [vmem:[%s1 + $0x98] sm:$0xff]
    %v34 = vld [vmem:[%s1 + $0xa0] sm:$0xff]
    %v35 = vld [vmem:[%s1 + $0xa8] sm:$0xff]
    %v36 = vld [vmem:[%s1 + $0xb0] sm:$0xff]
    %v37 = vld [vmem:[%s1 + $0xb8] sm:$0xff]
    %v38 = vld [vmem:[%s1 + $0xc0] sm:$0xff]
    %v39 = vld [vmem:[%s1 + $0xc8] sm:$0xff]
    %v40 = vld [vmem:[%s1 + $0xd0] sm:$0xff]
    %v41 = vld [vmem:[%s1 + $0xd8] sm:$0xff]
    %v42 = vld [vmem:[%s1 + $0xe0] sm:$0xff]
    %v43 = vld [vmem:[%s1 + $0xe8] sm:$0xff]
    %v44 = vld [vmem:[%s1 + $0xf0] sm:$0xff]
    %v45 = vld [vmem:[%s1 + $0xf8] sm:$0xff]
    %46 = vmatprep.subr.mxu0 0.0
    %47 = vmatpush1.msra.mxu0 %v29
    %48 = vmatprep.subr.mxu0 0.0
    %49 = vmatpush1.msra.mxu0 %v28
    %50 = vmatprep.subr.mxu0 0.0
    %51 = vmatpush1.msra.mxu0 %v27
    %52 = vmatprep.subr.mxu0 0.0
    %53 = vmatpush1.msra.mxu0 %v26
    %54 = vmatprep.subr.mxu0 0.0
    %55 = vmatpush1.msra.mxu0 %v25
    %56 = vmatprep.subr.mxu0 0.0
    %57 = vmatpush1.msra.mxu0 %v24
    %58 = vmatprep.subr.mxu0 0.0
    %59 = vmatpush1.msra.mxu0 %v23
    %60 = vmatprep.subr.mxu0 0.0
    %61 = vmatpush1.msra.mxu0 %v22
    %62 = vmatprep.subr.mxu0 0.0
    %63 = vmatpush1.msra.mxu0 %v21
    %64 = vmatprep.subr.mxu0 0.0
    %65 = vmatpush1.msra.mxu0 %v20
    %66 = vmatprep.subr.mxu0 0.0
    %67 = vmatpush1.msra.mxu0 %v19
    %68 = vmatprep.subr.mxu0 0.0
    %69 = vmatpush1.msra.mxu0 %v18
    %70 = vmatprep.subr.mxu0 0.0
    %71 = vmatpush1.msra.mxu0 %v17
    %72 = vmatprep.subr.mxu0 0.0
    %73 = vmatpush1.msra.mxu0 %v16
    %74 = vmatprep.subr.mxu0 0.0
    %75 = vmatpush1.msra.mxu0 %v15
    %76 = vmatprep.subr.mxu0 0.0
    %77 = vmatpush1.msra.mxu0 %v14
    %78 = vmatprep.subr.mxu0 0.0
    %79 = vmatpush2.msra.mxu0 %v45
    %80 = vmatprep.subr.mxu0 0.0
    %81 = vmatpush2.msra.mxu0 %v44
    %82 = vmatprep.subr.mxu0 0.0
    %83 = vmatpush2.msra.mxu0 %v43
    %84 = vmatprep.subr.mxu0 0.0
    %85 = vmatpush2.msra.mxu0 %v42
    %86 = vmatprep.subr.mxu0 0.0
    %87 = vmatpush2.msra.mxu0 %v41
    %88 = vmatprep.subr.mxu0 0.0
    %89 = vmatpush2.msra.mxu0 %v40
    %90 = vmatprep.subr.mxu0 0.0
    %91 = vmatpush2.msra.mxu0 %v39
    %92 = vmatprep.subr.mxu0 0.0
    %93 = vmatpush2.msra.mxu0 %v38
    %94 = vmatprep.subr.mxu0 0.0
    %95 = vmatpush2.msra.mxu0 %v37
    %96 = vmatprep.subr.mxu0 0.0
    %97 = vmatpush2.msra.mxu0 %v36
    %98 = vmatprep.subr.mxu0 0.0
    %99 = vmatpush2.msra.mxu0 %v35
    %100 = vmatprep.subr.mxu0 0.0
    %101 = vmatpush2.msra.mxu0 %v34
    %102 = vmatprep.subr.mxu0 0.0
    %103 = vmatpush2.msra.mxu0 %v33
    %104 = vmatprep.subr.mxu0 0.0
    %105 = vmatpush2.msra.mxu0 %v32
    %106 = vmatprep.subr.mxu0 0.0
    %107 = vmatpush2.msra.mxu0 %v31
    %108 = vmatprep.subr.mxu0 0.0
    %109 = vmatpush2.msra.mxu0 %v30
    %110 = vmatprep.mubr.f32.mxu0 %v13
    %111 = vmatmul.mubr.f32.gmra.mxu0 %v12
    %v112 = vpop.f32.mrf.mxu0
    %v113 = vadd.f32 0.0, %v112
    %v114 = vpop.f32.mrf.mxu0
    %115 = vdwg.mxu0
    %vm116 = vcmask 523264
    %117 = vst.msk [vmem:[#allocation2] sm:$0xff] %vm116, %v113
    // Predicated region
    $region10: #{tpu_custom_call.1} parent=1 // pred_check
      _
    $region11: #{tpu_custom_call.1} parent=1 // pred_check_branch
      %119 = sbr.rel (0) target = $region13
    $region12: #{tpu_custom_call.1} parent=1 // pred_region
      %s121 = ssub.s32 128, 128
      %122 = vsyncadd [#allocation3], %s121
      %s124 = sshll.u32 [#allocation2], 4
      %s125 = int_to_ptr.vmem [resolvable:$true] %s124
      %127 = dma.vmem_to_hbm [thread:$0]  %s125, 128, %s2, [#allocation3]
    $region13: #{tpu_custom_call.1} parent=1 // pred_fallthru
      _
    // Predicated region
    $region14: #{tpu_custom_call.1} parent=1 // pred_check
      _
    $region15: #{tpu_custom_call.1} parent=1 // pred_check_branch
      %129 = sbr.rel (0) target = $region17
    $region16: #{tpu_custom_call.1} parent=1 // pred_region
      %130 = dma.done [#allocation3], 128
    $region17: #{tpu_custom_call.1} parent=1 // pred_fallthru
      _
    %131 = vsyncpa [#allocation3], 1

</llo_original>
